<compile_context>
chip_gen: v7x
topology: tpu7x:2x2x1
jax: 0.10.0
libtpu: 0.0.40
codegen_flags: <defaults>
</compile_context>

<pallas_src>
import functools

import jax
import jax.numpy as jnp
from jax import lax
from jax.experimental import pallas as pl
from jax.experimental.pallas import tpu as pltpu


def _round_up(n, m):
    return ((n + m - 1) // m) * m


def tcn_block_kernel(x_ref, w1_ref, s1_ref, t1_ref, w2_ref, s2_ref, t2_ref,
                     wr_ref, br_ref, o_ref, *, K, dilation, P, L_pad):
    """One batch element: x_ref (Ci, 2P+L_pad) bf16 -> o_ref (Co, L_pad) f32."""
    T_h = P + L_pad                    # conv1 output width (includes conv2's left pad)
    xp = x_ref[...]                    # (Ci, 2P + L_pad), bf16

    # ---- conv1 (causal, dilated): h[:, j] = sum_k W1_k @ x_pad[:, j + k*d] ----
    h = jnp.dot(w1_ref[0], xp[:, 0:T_h], preferred_element_type=jnp.float32)
    for k in range(1, K):
        off = k * dilation
        h = h + jnp.dot(w1_ref[k], xp[:, off:off + T_h],
                        preferred_element_type=jnp.float32)
    # folded conv1 bias + eval-mode BatchNorm1d, then ReLU (all f32)
    h = jnp.maximum(h * s1_ref[...] + t1_ref[...], 0.0)
    # columns j < P correspond to conv2's zero padding -> force exact zeros there
    col = lax.broadcasted_iota(jnp.int32, h.shape, 1)
    h = jnp.where(col >= P, h, 0.0)
    hb = h.astype(jnp.bfloat16)

    # ---- conv2 (causal, dilated) ----
    y = jnp.dot(w2_ref[0], hb[:, 0:L_pad], preferred_element_type=jnp.float32)
    for k in range(1, K):
        off = k * dilation
        y = y + jnp.dot(w2_ref[k], hb[:, off:off + L_pad],
                        preferred_element_type=jnp.float32)
    y = jnp.maximum(y * s2_ref[...] + t2_ref[...], 0.0)

    # ---- residual (1x1 conv; identity residual is passed as an identity matrix) ----
    res = jnp.dot(wr_ref[...], xp[:, 2 * P:2 * P + L_pad],
                  preferred_element_type=jnp.float32) + br_ref[...]

    o_ref[...] = (y + res).astype(o_ref.dtype)


def tcn_block_forward(x, p, *, kernel_size=3, dilation=1, eps=1e-5):
    """x: (B, C_in, L) f32.  p: dict of PyTorch-layout parameters.  Returns (B, C_out, L)."""
    B, C_in, L = x.shape
    C_out = p["conv1_w"].shape[0]
    K = kernel_size
    P = (K - 1) * dilation

    Ci = _round_up(C_in, 8)                    # sublane-aligned channel dims
    Co = _round_up(C_out, 8)
    Lp = _round_up(max(L, 128), 128)           # lane-dense time axis
    Wx = 2 * P + Lp                            # x width after causal left pad

    # x: 2P left zero-pad (conv1 + conv2 causal windows), right pad to lane multiple,
    # zero-pad channels to a sublane multiple; bf16 for the MXU.
    xp = jnp.pad(x, ((0, 0), (0, Ci - C_in), (2 * P, Lp - L))).astype(jnp.bfloat16)

    # conv weights: (C_out, C_in, K) -> (K, Co, Ci_padded), bf16.
    w1 = jnp.transpose(p["conv1_w"], (2, 0, 1))
    w1 = jnp.pad(w1, ((0, 0), (0, Co - C_out), (0, Ci - C_in))).astype(jnp.bfloat16)
    w2 = jnp.transpose(p["conv2_w"], (2, 0, 1))
    w2 = jnp.pad(w2, ((0, 0), (0, Co - C_out), (0, Co - C_out))).astype(jnp.bfloat16)

    # Fold conv bias + eval BatchNorm into per-channel scale/shift (kept in f32).
    def bn_fold(g, be, m, v, b):
        s = g / jnp.sqrt(v + eps)
        t = (b - m) * s + be
        s = jnp.pad(s, (0, Co - C_out)).reshape(Co, 1).astype(jnp.float32)
        t = jnp.pad(t, (0, Co - C_out)).reshape(Co, 1).astype(jnp.float32)
        return s, t

    s1, t1 = bn_fold(p["bn1_g"], p["bn1_b"], p["bn1_m"], p["bn1_v"], p["conv1_b"])
    s2, t2 = bn_fold(p["bn2_g"], p["bn2_b"], p["bn2_m"], p["bn2_v"], p["conv2_b"])

    if "res_w" in p:                           # 1x1 conv residual (C_in != C_out)
        wr = p["res_w"].reshape(C_out, C_in)
        br = p["res_b"]
    else:                                      # nn.Identity residual
        wr = jnp.eye(C_out, C_in, dtype=jnp.float32)
        br = jnp.zeros((C_out,), jnp.float32)
    wr = jnp.pad(wr, ((0, Co - C_out), (0, Ci - C_in))).astype(jnp.bfloat16)
    br = jnp.pad(br, (0, Co - C_out)).reshape(Co, 1).astype(jnp.float32)

    kernel = functools.partial(tcn_block_kernel, K=K, dilation=dilation, P=P, L_pad=Lp)

    out = pl.pallas_call(
        kernel,
        out_shape=jax.ShapeDtypeStruct((B, Co, Lp), jnp.float32),
        grid_spec=pltpu.PrefetchScalarGridSpec(
            num_scalar_prefetch=0,
            grid=(B,),                                           # one step per batch element
            in_specs=[
                pl.BlockSpec((None, Ci, Wx), lambda b: (b, 0, 0)),   # x (per-batch slice)
                pl.BlockSpec((K, Co, Ci), lambda b: (0, 0, 0)),      # W1 (resident)
                pl.BlockSpec((Co, 1), lambda b: (0, 0)),             # scale1
                pl.BlockSpec((Co, 1), lambda b: (0, 0)),             # shift1
                pl.BlockSpec((K, Co, Co), lambda b: (0, 0, 0)),      # W2 (resident)
                pl.BlockSpec((Co, 1), lambda b: (0, 0)),             # scale2
                pl.BlockSpec((Co, 1), lambda b: (0, 0)),             # shift2
                pl.BlockSpec((Co, Ci), lambda b: (0, 0)),            # Wr (residual 1x1)
                pl.BlockSpec((Co, 1), lambda b: (0, 0)),             # br
            ],
            out_specs=pl.BlockSpec((None, Co, Lp), lambda b: (b, 0, 0)),
        ),
        compiler_params=pltpu.CompilerParams(
            dimension_semantics=("parallel",)),
    )(xp, w1, s1, t1, w2, s2, t2, wr, br)

    return out[:, :C_out, :L]


def tcn_block_reference(x, p, *, kernel_size=3, dilation=1, eps=1e-5):
    """Pure-JAX reference mirroring the PyTorch TCNBlock (eval-mode BN)."""
    P = (kernel_size - 1) * dilation

    def conv1d(z, w, b, pad, dil):
        out = lax.conv_general_dilated(
            z, w, window_strides=(1,), padding=[(pad, pad)],
            rhs_dilation=(dil,), dimension_numbers=("NCH", "OIH", "NCH"))
        return out + b[None, :, None]

    def bn(z, g, be, m, v):
        return ((z - m[None, :, None]) / jnp.sqrt(v[None, :, None] + eps)
                * g[None, :, None] + be[None, :, None])

    if "res_w" in p:
        res = conv1d(x, p["res_w"], p["res_b"], 0, 1)
    else:
        res = x
    h = jax.nn.relu(bn(conv1d(x, p["conv1_w"], p["conv1_b"], P, dilation),
                       p["bn1_g"], p["bn1_b"], p["bn1_m"], p["bn1_v"]))
    y = jax.nn.relu(bn(conv1d(h, p["conv2_w"], p["conv2_b"], P, dilation),
                       p["bn2_g"], p["bn2_b"], p["bn2_m"], p["bn2_v"]))
    Lm = min(y.shape[2], res.shape[2])
    return y[:, :, :Lm] + res[:, :, :Lm]


if __name__ == "__main__":
    # Small shapes consistent with the module: batch=2, input_dim=4, output_dim=8, L=16.
    B, C_in, C_out, L = 2, 4, 8, 16
    K, dilation = 3, 1

    key = jax.random.PRNGKey(0)
    keys = jax.random.split(key, 16)

    x = jax.random.normal(keys[0], (B, C_in, L), dtype=jnp.float32)

    params = {
        "conv1_w": jax.random.normal(keys[1], (C_out, C_in, K), jnp.float32)
                   / jnp.sqrt(float(C_in * K)),
        "conv1_b": jax.random.normal(keys[2], (C_out,), jnp.float32) * 0.05,
        "bn1_g": jax.random.uniform(keys[3], (C_out,), jnp.float32, 0.8, 1.2),
        "bn1_b": jax.random.normal(keys[4], (C_out,), jnp.float32) * 0.1,
        "bn1_m": jax.random.normal(keys[5], (C_out,), jnp.float32) * 0.1,
        "bn1_v": jax.random.uniform(keys[6], (C_out,), jnp.float32, 0.8, 1.2),
        "conv2_w": jax.random.normal(keys[7], (C_out, C_out, K), jnp.float32)
                   / jnp.sqrt(float(C_out * K)),
        "conv2_b": jax.random.normal(keys[8], (C_out,), jnp.float32) * 0.05,
        "bn2_g": jax.random.uniform(keys[9], (C_out,), jnp.float32, 0.8, 1.2),
        "bn2_b": jax.random.normal(keys[10], (C_out,), jnp.float32) * 0.1,
        "bn2_m": jax.random.normal(keys[11], (C_out,), jnp.float32) * 0.1,
        "bn2_v": jax.random.uniform(keys[12], (C_out,), jnp.float32, 0.8, 1.2),
        "res_w": jax.random.normal(keys[13], (C_out, C_in, 1), jnp.float32)
                 / jnp.sqrt(float(C_in)),
        "res_b": jax.random.normal(keys[14], (C_out,), jnp.float32) * 0.05,
    }

    out = tcn_block_forward(x, params, kernel_size=K, dilation=dilation)
    out = jax.block_until_ready(out)

    ref = tcn_block_reference(x, params, kernel_size=K, dilation=dilation)
    assert out.shape == (B, C_out, L)
    # bf16 matmul operands with f32 accumulation vs f32 reference -> loose-ish tolerance.
    assert jnp.allclose(out, ref, atol=8e-2, rtol=5e-2), "mismatch vs reference"

    print("KERNEL_OK")
</pallas_src>

<mosaic_0001>
module attributes {stable_mosaic.version = 11 : i64} {
  func.func @tcn_block_kernel(%arg0: i32, %arg1: memref<1x8x132xbf16, #tpu.memory_space<vmem>>, %arg2: memref<3x8x8xbf16, #tpu.memory_space<vmem>>, %arg3: memref<8x1xf32, #tpu.memory_space<vmem>>, %arg4: memref<8x1xf32, #tpu.memory_space<vmem>>, %arg5: memref<3x8x8xbf16, #tpu.memory_space<vmem>>, %arg6: memref<8x1xf32, #tpu.memory_space<vmem>>, %arg7: memref<8x1xf32, #tpu.memory_space<vmem>>, %arg8: memref<8x8xbf16, #tpu.memory_space<vmem>>, %arg9: memref<8x1xf32, #tpu.memory_space<vmem>>, %arg10: memref<1x8x128xf32, #tpu.memory_space<vmem>>) attributes {dimension_semantics = [#tpu.dimension_semantics<parallel>], iteration_bounds = array<i64: 2>, scalar_prefetch = 0 : i64, scratch_operands = 0 : i64, tpu.core_type = #tpu.core_type<tc>, window_params = [{transform_indices = @transform_0, window_bounds = array<i64: 1, 8, 132>}, {pipeline_mode = #tpu.pipeline_mode<synchronous>, transform_indices = @transform_1, window_bounds = array<i64: 3, 8, 8>}, {pipeline_mode = #tpu.pipeline_mode<synchronous>, transform_indices = @transform_2, window_bounds = array<i64: 8, 1>}, {pipeline_mode = #tpu.pipeline_mode<synchronous>, transform_indices = @transform_3, window_bounds = array<i64: 8, 1>}, {pipeline_mode = #tpu.pipeline_mode<synchronous>, transform_indices = @transform_4, window_bounds = array<i64: 3, 8, 8>}, {pipeline_mode = #tpu.pipeline_mode<synchronous>, transform_indices = @transform_5, window_bounds = array<i64: 8, 1>}, {pipeline_mode = #tpu.pipeline_mode<synchronous>, transform_indices = @transform_6, window_bounds = array<i64: 8, 1>}, {pipeline_mode = #tpu.pipeline_mode<synchronous>, transform_indices = @transform_7, window_bounds = array<i64: 8, 8>}, {pipeline_mode = #tpu.pipeline_mode<synchronous>, transform_indices = @transform_8, window_bounds = array<i64: 8, 1>}, {transform_indices = @transform_9, window_bounds = array<i64: 1, 8, 128>}]} {
    %c0 = arith.constant 0 : index
    %c0_0 = arith.constant 0 : index
    %c0_1 = arith.constant 0 : index
    %0 = vector.load %arg1[%c0, %c0_0, %c0_1] : memref<1x8x132xbf16, #tpu.memory_space<vmem>>, vector<1x8x132xbf16>
    %1 = vector.shape_cast %0 : vector<1x8x132xbf16> to vector<8x132xbf16>
    %c0_2 = arith.constant 0 : index
    %c0_3 = arith.constant 0 : index
    %c0_4 = arith.constant 0 : index
    %2 = vector.load %arg2[%c0_2, %c0_3, %c0_4] : memref<3x8x8xbf16, #tpu.memory_space<vmem>>, vector<1x8x8xbf16>
    %3 = vector.shape_cast %2 : vector<1x8x8xbf16> to vector<8x8xbf16>
    %4 = vector.extract_strided_slice %1 {offsets = [0, 0], sizes = [8, 130], strides = [1, 1]} : vector<8x132xbf16> to vector<8x130xbf16>
    %cst = arith.constant dense<0.000000e+00> : vector<8x130xf32>
    %5 = tpu.matmul %3, %4, %cst {dimension_numbers = #tpu.dot_dimension_numbers<[1], [0], [0], [1], [0, 0, 1, 1], [], []>} : vector<8x8xbf16>, vector<8x130xbf16>, vector<8x130xf32> -> vector<8x130xf32>
    %c1 = arith.constant 1 : index
    %c0_5 = arith.constant 0 : index
    %c0_6 = arith.constant 0 : index
    %6 = vector.load %arg2[%c1, %c0_5, %c0_6] : memref<3x8x8xbf16, #tpu.memory_space<vmem>>, vector<1x8x8xbf16>
    %7 = vector.shape_cast %6 : vector<1x8x8xbf16> to vector<8x8xbf16>
    %8 = vector.extract_strided_slice %1 {offsets = [0, 1], sizes = [8, 130], strides = [1, 1]} : vector<8x132xbf16> to vector<8x130xbf16>
    %cst_7 = arith.constant dense<0.000000e+00> : vector<8x130xf32>
    %9 = tpu.matmul %7, %8, %cst_7 {dimension_numbers = #tpu.dot_dimension_numbers<[1], [0], [0], [1], [0, 0, 1, 1], [], []>} : vector<8x8xbf16>, vector<8x130xbf16>, vector<8x130xf32> -> vector<8x130xf32>
    %10 = arith.addf %5, %9 : vector<8x130xf32>
    %c2 = arith.constant 2 : index
    %c0_8 = arith.constant 0 : index
    %c0_9 = arith.constant 0 : index
    %11 = vector.load %arg2[%c2, %c0_8, %c0_9] : memref<3x8x8xbf16, #tpu.memory_space<vmem>>, vector<1x8x8xbf16>
    %12 = vector.shape_cast %11 : vector<1x8x8xbf16> to vector<8x8xbf16>
    %13 = vector.extract_strided_slice %1 {offsets = [0, 2], sizes = [8, 130], strides = [1, 1]} : vector<8x132xbf16> to vector<8x130xbf16>
    %cst_10 = arith.constant dense<0.000000e+00> : vector<8x130xf32>
    %14 = tpu.matmul %12, %13, %cst_10 {dimension_numbers = #tpu.dot_dimension_numbers<[1], [0], [0], [1], [0, 0, 1, 1], [], []>} : vector<8x8xbf16>, vector<8x130xbf16>, vector<8x130xf32> -> vector<8x130xf32>
    %15 = arith.addf %10, %14 : vector<8x130xf32>
    %c0_11 = arith.constant 0 : index
    %c0_12 = arith.constant 0 : index
    %16 = vector.load %arg3[%c0_11, %c0_12] : memref<8x1xf32, #tpu.memory_space<vmem>>, vector<8x1xf32>
    %17 = vector.broadcast %16 : vector<8x1xf32> to vector<8x130xf32>
    %18 = arith.mulf %15, %17 : vector<8x130xf32>
    %c0_13 = arith.constant 0 : index
    %c0_14 = arith.constant 0 : index
    %19 = vector.load %arg4[%c0_13, %c0_14] : memref<8x1xf32, #tpu.memory_space<vmem>>, vector<8x1xf32>
    %20 = vector.broadcast %19 : vector<8x1xf32> to vector<8x130xf32>
    %21 = arith.addf %18, %20 : vector<8x130xf32>
    %cst_15 = arith.constant 0.000000e+00 : f32
    %22 = vector.broadcast %cst_15 : f32 to vector<8x130xf32>
    %23 = arith.maximumf %21, %22 : vector<8x130xf32>
    %24 = tpu.iota {dimensions = array<i32: 1>} : vector<8x130xi32>
    %c2_i32 = arith.constant 2 : i32
    %25 = vector.broadcast %c2_i32 : i32 to vector<8x130xi32>
    %26 = arith.cmpi sge, %24, %25 : vector<8x130xi32>
    %cst_16 = arith.constant 0.000000e+00 : f32
    %27 = vector.broadcast %cst_16 : f32 to vector<8x130xf32>
    %28 = arith.select %26, %23, %27 : vector<8x130xi1>, vector<8x130xf32>
    %29 = arith.truncf %28 : vector<8x130xf32> to vector<8x130xbf16>
    %c0_17 = arith.constant 0 : index
    %c0_18 = arith.constant 0 : index
    %c0_19 = arith.constant 0 : index
    %30 = vector.load %arg5[%c0_17, %c0_18, %c0_19] : memref<3x8x8xbf16, #tpu.memory_space<vmem>>, vector<1x8x8xbf16>
    %31 = vector.shape_cast %30 : vector<1x8x8xbf16> to vector<8x8xbf16>
    %32 = vector.extract_strided_slice %29 {offsets = [0, 0], sizes = [8, 128], strides = [1, 1]} : vector<8x130xbf16> to vector<8x128xbf16>
    %cst_20 = arith.constant dense<0.000000e+00> : vector<8x128xf32>
    %33 = tpu.matmul %31, %32, %cst_20 {dimension_numbers = #tpu.dot_dimension_numbers<[1], [0], [0], [1], [0, 0, 1, 1], [], []>} : vector<8x8xbf16>, vector<8x128xbf16>, vector<8x128xf32> -> vector<8x128xf32>
    %c1_21 = arith.constant 1 : index
    %c0_22 = arith.constant 0 : index
    %c0_23 = arith.constant 0 : index
    %34 = vector.load %arg5[%c1_21, %c0_22, %c0_23] : memref<3x8x8xbf16, #tpu.memory_space<vmem>>, vector<1x8x8xbf16>
    %35 = vector.shape_cast %34 : vector<1x8x8xbf16> to vector<8x8xbf16>
    %36 = vector.extract_strided_slice %29 {offsets = [0, 1], sizes = [8, 128], strides = [1, 1]} : vector<8x130xbf16> to vector<8x128xbf16>
    %cst_24 = arith.constant dense<0.000000e+00> : vector<8x128xf32>
    %37 = tpu.matmul %35, %36, %cst_24 {dimension_numbers = #tpu.dot_dimension_numbers<[1], [0], [0], [1], [0, 0, 1, 1], [], []>} : vector<8x8xbf16>, vector<8x128xbf16>, vector<8x128xf32> -> vector<8x128xf32>
    %38 = arith.addf %33, %37 : vector<8x128xf32>
    %c2_25 = arith.constant 2 : index
    %c0_26 = arith.constant 0 : index
    %c0_27 = arith.constant 0 : index
    %39 = vector.load %arg5[%c2_25, %c0_26, %c0_27] : memref<3x8x8xbf16, #tpu.memory_space<vmem>>, vector<1x8x8xbf16>
    %40 = vector.shape_cast %39 : vector<1x8x8xbf16> to vector<8x8xbf16>
    %41 = vector.extract_strided_slice %29 {offsets = [0, 2], sizes = [8, 128], strides = [1, 1]} : vector<8x130xbf16> to vector<8x128xbf16>
    %cst_28 = arith.constant dense<0.000000e+00> : vector<8x128xf32>
    %42 = tpu.matmul %40, %41, %cst_28 {dimension_numbers = #tpu.dot_dimension_numbers<[1], [0], [0], [1], [0, 0, 1, 1], [], []>} : vector<8x8xbf16>, vector<8x128xbf16>, vector<8x128xf32> -> vector<8x128xf32>
    %43 = arith.addf %38, %42 : vector<8x128xf32>
    %c0_29 = arith.constant 0 : index
    %c0_30 = arith.constant 0 : index
    %44 = vector.load %arg6[%c0_29, %c0_30] : memref<8x1xf32, #tpu.memory_space<vmem>>, vector<8x1xf32>
    %45 = vector.broadcast %44 : vector<8x1xf32> to vector<8x128xf32>
    %46 = arith.mulf %43, %45 : vector<8x128xf32>
    %c0_31 = arith.constant 0 : index
    %c0_32 = arith.constant 0 : index
    %47 = vector.load %arg7[%c0_31, %c0_32] : memref<8x1xf32, #tpu.memory_space<vmem>>, vector<8x1xf32>
    %48 = vector.broadcast %47 : vector<8x1xf32> to vector<8x128xf32>
    %49 = arith.addf %46, %48 : vector<8x128xf32>
    %cst_33 = arith.constant 0.000000e+00 : f32
    %50 = vector.broadcast %cst_33 : f32 to vector<8x128xf32>
    %51 = arith.maximumf %49, %50 : vector<8x128xf32>
    %c0_34 = arith.constant 0 : index
    %c0_35 = arith.constant 0 : index
    %52 = vector.load %arg8[%c0_34, %c0_35] : memref<8x8xbf16, #tpu.memory_space<vmem>>, vector<8x8xbf16>
    %53 = vector.extract_strided_slice %1 {offsets = [0, 4], sizes = [8, 128], strides = [1, 1]} : vector<8x132xbf16> to vector<8x128xbf16>
    %cst_36 = arith.constant dense<0.000000e+00> : vector<8x128xf32>
    %54 = tpu.matmul %52, %53, %cst_36 {dimension_numbers = #tpu.dot_dimension_numbers<[1], [0], [0], [1], [0, 0, 1, 1], [], []>} : vector<8x8xbf16>, vector<8x128xbf16>, vector<8x128xf32> -> vector<8x128xf32>
    %c0_37 = arith.constant 0 : index
    %c0_38 = arith.constant 0 : index
    %55 = vector.load %arg9[%c0_37, %c0_38] : memref<8x1xf32, #tpu.memory_space<vmem>>, vector<8x1xf32>
    %56 = vector.broadcast %55 : vector<8x1xf32> to vector<8x128xf32>
    %57 = arith.addf %54, %56 : vector<8x128xf32>
    %58 = arith.addf %51, %57 : vector<8x128xf32>
    %c0_39 = arith.constant 0 : index
    %c0_40 = arith.constant 0 : index
    %c0_41 = arith.constant 0 : index
    %59 = vector.load %arg10[%c0_39, %c0_40, %c0_41] : memref<1x8x128xf32, #tpu.memory_space<vmem>>, vector<1x8x128xf32>
    %60 = vector.shape_cast %59 : vector<1x8x128xf32> to vector<8x128xf32>
    %61 = vector.shape_cast %58 : vector<8x128xf32> to vector<1x8x128xf32>
    tpu.vector_store %arg10[%c0_39, %c0_40, %c0_41], %61 {strides = array<i32>} : memref<1x8x128xf32, #tpu.memory_space<vmem>>, vector<1x8x128xf32>,
    return
  }
  func.func @transform_0(%arg0: i32) -> (i32, i32, i32) {
    %c0_i32 = arith.constant 0 : i32
    %c0_i32_0 = arith.constant 0 : i32
    %c0_i32_1 = arith.constant 0 : i32
    return %arg0, %c0_i32, %c0_i32_0 : i32, i32, i32
  }
  func.func @transform_1(%arg0: i32) -> (i32, i32, i32) {
    %c0_i32 = arith.constant 0 : i32
    %c0_i32_0 = arith.constant 0 : i32
    %c0_i32_1 = arith.constant 0 : i32
    %c0_i32_2 = arith.constant 0 : i32
    return %c0_i32, %c0_i32_0, %c0_i32_1 : i32, i32, i32
  }
  func.func @transform_2(%arg0: i32) -> (i32, i32) {
    %c0_i32 = arith.constant 0 : i32
    %c0_i32_0 = arith.constant 0 : i32
    %c0_i32_1 = arith.constant 0 : i32
    return %c0_i32, %c0_i32_0 : i32, i32
  }
  func.func @transform_3(%arg0: i32) -> (i32, i32) {
    %c0_i32 = arith.constant 0 : i32
    %c0_i32_0 = arith.constant 0 : i32
    %c0_i32_1 = arith.constant 0 : i32
    return %c0_i32, %c0_i32_0 : i32, i32
  }
  func.func @transform_4(%arg0: i32) -> (i32, i32, i32) {
    %c0_i32 = arith.constant 0 : i32
    %c0_i32_0 = arith.constant 0 : i32
    %c0_i32_1 = arith.constant 0 : i32
    %c0_i32_2 = arith.constant 0 : i32
    return %c0_i32, %c0_i32_0, %c0_i32_1 : i32, i32, i32
  }
  func.func @transform_5(%arg0: i32) -> (i32, i32) {
    %c0_i32 = arith.constant 0 : i32
    %c0_i32_0 = arith.constant 0 : i32
    %c0_i32_1 = arith.constant 0 : i32
    return %c0_i32, %c0_i32_0 : i32, i32
  }
  func.func @transform_6(%arg0: i32) -> (i32, i32) {
    %c0_i32 = arith.constant 0 : i32
    %c0_i32_0 = arith.constant 0 : i32
    %c0_i32_1 = arith.constant 0 : i32
    return %c0_i32, %c0_i32_0 : i32, i32
  }
  func.func @transform_7(%arg0: i32) -> (i32, i32) {
    %c0_i32 = arith.constant 0 : i32
    %c0_i32_0 = arith.constant 0 : i32
    %c0_i32_1 = arith.constant 0 : i32
    return %c0_i32, %c0_i32_0 : i32, i32
  }
  func.func @transform_8(%arg0: i32) -> (i32, i32) {
    %c0_i32 = arith.constant 0 : i32
    %c0_i32_0 = arith.constant 0 : i32
    %c0_i32_1 = arith.constant 0 : i32
    return %c0_i32, %c0_i32_0 : i32, i32
  }
  func.func @transform_9(%arg0: i32) -> (i32, i32, i32) {
    %c0_i32 = arith.constant 0 : i32
    %c0_i32_0 = arith.constant 0 : i32
    %c0_i32_1 = arith.constant 0 : i32
    return %arg0, %c0_i32, %c0_i32_0 : i32, i32, i32
  }
}

</mosaic_0001>

<llo_original>
// kernel: tpu_custom_call.1
$region0: #{tpu_custom_call.1}
  #allocation0 [shape = 'u32[]', space=smem, size = 0x4, offset = 0x4, fixed_abs, tag = 'smem constant byte address 0x4 - core index']
  #allocation1 [shape = 'u32[144,128]{1,0:T(1,128)}', space=vmem, size = 0x12000, scoped, tag = 'internal scratch']
  %s0 = inlined_call_operand.vmem [shape: bf16[2,8,132], index: 0, kind: input, shape index: {}]
  %s1 = inlined_call_operand.vmem [shape: bf16[3,8,8], index: 1, kind: input, shape index: {}]
  %s2 = inlined_call_operand.vmem [shape: f32[8,1], index: 2, kind: input, shape index: {}]
  %s3 = inlined_call_operand.vmem [shape: f32[8,1], index: 3, kind: input, shape index: {}]
  %s4 = inlined_call_operand.vmem [shape: bf16[3,8,8], index: 4, kind: input, shape index: {}]
  %s5 = inlined_call_operand.vmem [shape: f32[8,1], index: 5, kind: input, shape index: {}]
  %s6 = inlined_call_operand.vmem [shape: f32[8,1], index: 6, kind: input, shape index: {}]
  %s7 = inlined_call_operand.vmem [shape: bf16[8,8], index: 7, kind: input, shape index: {}]
  %s8 = inlined_call_operand.vmem [shape: f32[8,1], index: 8, kind: input, shape index: {}]
  %s9 = inlined_call_operand.hbm [shape: f32[2,8,128], index: 9, kind: output, shape index: {}]
  %s10 = sld [smem:[#allocation0]]
  $region69: #{tpu_custom_call.1} parent=0
    _
  %s12 = ssub.s32 1, %s10
  %s13 = scalar_select 0, %s12, %s10
  $region1: #{tpu_custom_call.1} parent=0
    #allocation2 [shape = 'u8[8192]{0}', space=vmem, size = 0x2000, scoped, tag = 'output window, operand 0']
    #allocation3 [shape = 's32[2]{0}', space=sflag, size = 0x8, scoped, tag = 'scoped memory for tpu_custom_call.1']
    %14 = vsyncpa [#allocation3], 0
    %s15 = scalar_lea.sflag [#allocation3], 1
    %16 = vsyncpa %s15, 0
    loop: start=0, step=1, limit=4
    $region2: #{tpu_custom_call.1} parent=1 // loop_pre_header
      _
    $region3: #{tpu_custom_call.1} parent=1 // loop_header
      %s18 = sphi 0, %s22
      %p19 = scmp.ge.s32.totalorder %s18, 4
      %s28 = sphi 0, %s30
      %s31 = sphi 0, %s28
      %s32 = sphi 0, %s31
      %s48 = sphi 0, %s32
      %s52 = sphi 0, %s52
      %s54 = sphi 0, %s52
      %s55 = sphi 0, %s54
      %s69 = sphi 0, %s55
      %s73 = sphi 0, %s73
      %s75 = sphi 0, %s73
      %s76 = sphi 0, %s75
      %s90 = sphi 0, %s76
      %s94 = sphi 0, %s94
      %s96 = sphi 0, %s94
      %s97 = sphi 0, %s96
      %s111 = sphi 0, %s97
      %s115 = sphi 0, %s115
      %s117 = sphi 0, %s115
      %s118 = sphi 0, %s117
      %s132 = sphi 0, %s118
      %s136 = sphi 0, %s136
      %s138 = sphi 0, %s136
      %s139 = sphi 0, %s138
      %s153 = sphi 0, %s139
      %s157 = sphi 0, %s157
      %s159 = sphi 0, %s157
      %s160 = sphi 0, %s159
      %s174 = sphi 0, %s160
      %s178 = sphi 0, %s178
      %s180 = sphi 0, %s178
      %s181 = sphi 0, %s180
      %s195 = sphi 0, %s181
      %s199 = sphi 0, %s199
      %s201 = sphi 0, %s199
      %s202 = sphi 0, %s201
      %s216 = sphi 0, %s202
      %s222 = sphi 0, %s224
      %s225 = sphi 0, %s222
      %s226 = sphi 0, %s225
      %s242 = sphi 0, %s226
    $region4: #{tpu_custom_call.1} parent=1 // loop_header_branch
      %21 = sbr.rel (%p19) target = $region8
    $region5: #{tpu_custom_call.1} parent=1 // loop_body
      %s23 = ssub.s32 %s18, 1
      %s24 = ssub.s32 %s18, 2
      %s25 = sadd.s32 %s18, 1
      %s26 = ssub.s32 %s18, %s25
      %p27 = scmp.eq.s32.totalorder %s26, 0
      %s29 = sadd.s32 %s28, 1
      %s30 = scalar_select %p27, %s28, %s29
      %p33 = pneg %p27
      %p34 = scmp.eq.s32.totalorder %s18, 1
      %p35 = por %p33, %p34
      %p36 = scmp.ne.s32.totalorder %s28, %s31
      %p37 = scmp.eq.s32.totalorder %s18, 0
      %p38 = por %p36, %p37
      %p39 = scmp.ne.s32.totalorder %s28, %s31
      %p40 = scmp.eq.s32.totalorder %s23, 1
      %p41 = por %p39, %p40
      %p42 = scmp.ne.s32.totalorder %s31, %s32
      %p43 = scmp.eq.s32.totalorder %s23, 0
      %p44 = por %p42, %p43
      %p45 = scmp.ne.s32.totalorder %s31, %s32
      %p46 = scmp.eq.s32.totalorder %s24, 1
      %p47 = por %p45, %p46
      %p49 = scmp.ne.s32.totalorder %s32, %s48
      %p50 = scmp.eq.s32.totalorder %s24, 0
      %p51 = por %p49, %p50
      %s53 = sadd.s32 %s52, 1
      %p56 = scmp.eq.s32.totalorder %s18, 1
      %p57 = scmp.ne.s32.totalorder %s52, %s54
      %p58 = scmp.eq.s32.totalorder %s18, 0
      %p59 = por %p57, %p58
      %p60 = scmp.ne.s32.totalorder %s52, %s54
      %p61 = scmp.eq.s32.totalorder %s23, 1
      %p62 = por %p60, %p61
      %p63 = scmp.ne.s32.totalorder %s54, %s55
      %p64 = scmp.eq.s32.totalorder %s23, 0
      %p65 = por %p63, %p64
      %p66 = scmp.ne.s32.totalorder %s54, %s55
      %p67 = scmp.eq.s32.totalorder %s24, 1
      %p68 = por %p66, %p67
      %p70 = scmp.ne.s32.totalorder %s55, %s69
      %p71 = scmp.eq.s32.totalorder %s24, 0
      %p72 = por %p70, %p71
      %s74 = sadd.s32 %s73, 1
      %p77 = scmp.eq.s32.totalorder %s18, 1
      %p78 = scmp.ne.s32.totalorder %s73, %s75
      %p79 = scmp.eq.s32.totalorder %s18, 0
      %p80 = por %p78, %p79
      %p81 = scmp.ne.s32.totalorder %s73, %s75
      %p82 = scmp.eq.s32.totalorder %s23, 1
      %p83 = por %p81, %p82
      %p84 = scmp.ne.s32.totalorder %s75, %s76
      %p85 = scmp.eq.s32.totalorder %s23, 0
      %p86 = por %p84, %p85
      %p87 = scmp.ne.s32.totalorder %s75, %s76
      %p88 = scmp.eq.s32.totalorder %s24, 1
      %p89 = por %p87, %p88
      %p91 = scmp.ne.s32.totalorder %s76, %s90
      %p92 = scmp.eq.s32.totalorder %s24, 0
      %p93 = por %p91, %p92
      %s95 = sadd.s32 %s94, 1
      %p98 = scmp.eq.s32.totalorder %s18, 1
      %p99 = scmp.ne.s32.totalorder %s94, %s96
      %p100 = scmp.eq.s32.totalorder %s18, 0
      %p101 = por %p99, %p100
      %p102 = scmp.ne.s32.totalorder %s94, %s96
      %p103 = scmp.eq.s32.totalorder %s23, 1
      %p104 = por %p102, %p103
      %p105 = scmp.ne.s32.totalorder %s96, %s97
      %p106 = scmp.eq.s32.totalorder %s23, 0
      %p107 = por %p105, %p106
      %p108 = scmp.ne.s32.totalorder %s96, %s97
      %p109 = scmp.eq.s32.totalorder %s24, 1
      %p110 = por %p108, %p109
      %p112 = scmp.ne.s32.totalorder %s97, %s111
      %p113 = scmp.eq.s32.totalorder %s24, 0
      %p114 = por %p112, %p113
      %s116 = sadd.s32 %s115, 1
      %p119 = scmp.eq.s32.totalorder %s18, 1
      %p120 = scmp.ne.s32.totalorder %s115, %s117
      %p121 = scmp.eq.s32.totalorder %s18, 0
      %p122 = por %p120, %p121
      %p123 = scmp.ne.s32.totalorder %s115, %s117
      %p124 = scmp.eq.s32.totalorder %s23, 1
      %p125 = por %p123, %p124
      %p126 = scmp.ne.s32.totalorder %s117, %s118
      %p127 = scmp.eq.s32.totalorder %s23, 0
      %p128 = por %p126, %p127
      %p129 = scmp.ne.s32.totalorder %s117, %s118
      %p130 = scmp.eq.s32.totalorder %s24, 1
      %p131 = por %p129, %p130
      %p133 = scmp.ne.s32.totalorder %s118, %s132
      %p134 = scmp.eq.s32.totalorder %s24, 0
      %p135 = por %p133, %p134
      %s137 = sadd.s32 %s136, 1
      %p140 = scmp.eq.s32.totalorder %s18, 1
      %p141 = scmp.ne.s32.totalorder %s136, %s138
      %p142 = scmp.eq.s32.totalorder %s18, 0
      %p143 = por %p141, %p142
      %p144 = scmp.ne.s32.totalorder %s136, %s138
      %p145 = scmp.eq.s32.totalorder %s23, 1
      %p146 = por %p144, %p145
      %p147 = scmp.ne.s32.totalorder %s138, %s139
      %p148 = scmp.eq.s32.totalorder %s23, 0
      %p149 = por %p147, %p148
      %p150 = scmp.ne.s32.totalorder %s138, %s139
      %p151 = scmp.eq.s32.totalorder %s24, 1
      %p152 = por %p150, %p151
      %p154 = scmp.ne.s32.totalorder %s139, %s153
      %p155 = scmp.eq.s32.totalorder %s24, 0
      %p156 = por %p154, %p155
      %s158 = sadd.s32 %s157, 1
      %p161 = scmp.eq.s32.totalorder %s18, 1
      %p162 = scmp.ne.s32.totalorder %s157, %s159
      %p163 = scmp.eq.s32.totalorder %s18, 0
      %p164 = por %p162, %p163
      %p165 = scmp.ne.s32.totalorder %s157, %s159
      %p166 = scmp.eq.s32.totalorder %s23, 1
      %p167 = por %p165, %p166
      %p168 = scmp.ne.s32.totalorder %s159, %s160
      %p169 = scmp.eq.s32.totalorder %s23, 0
      %p170 = por %p168, %p169
      %p171 = scmp.ne.s32.totalorder %s159, %s160
      %p172 = scmp.eq.s32.totalorder %s24, 1
      %p173 = por %p171, %p172
      %p175 = scmp.ne.s32.totalorder %s160, %s174
      %p176 = scmp.eq.s32.totalorder %s24, 0
      %p177 = por %p175, %p176
      %s179 = sadd.s32 %s178, 1
      %p182 = scmp.eq.s32.totalorder %s18, 1
      %p183 = scmp.ne.s32.totalorder %s178, %s180
      %p184 = scmp.eq.s32.totalorder %s18, 0
      %p185 = por %p183, %p184
      %p186 = scmp.ne.s32.totalorder %s178, %s180
      %p187 = scmp.eq.s32.totalorder %s23, 1
      %p188 = por %p186, %p187
      %p189 = scmp.ne.s32.totalorder %s180, %s181
      %p190 = scmp.eq.s32.totalorder %s23, 0
      %p191 = por %p189, %p190
      %p192 = scmp.ne.s32.totalorder %s180, %s181
      %p193 = scmp.eq.s32.totalorder %s24, 1
      %p194 = por %p192, %p193
      %p196 = scmp.ne.s32.totalorder %s181, %s195
      %p197 = scmp.eq.s32.totalorder %s24, 0
      %p198 = por %p196, %p197
      %s200 = sadd.s32 %s199, 1
      %p203 = scmp.eq.s32.totalorder %s18, 1
      %p204 = scmp.ne.s32.totalorder %s199, %s201
      %p205 = scmp.eq.s32.totalorder %s18, 0
      %p206 = por %p204, %p205
      %p207 = scmp.ne.s32.totalorder %s199, %s201
      %p208 = scmp.eq.s32.totalorder %s23, 1
      %p209 = por %p207, %p208
      %p210 = scmp.ne.s32.totalorder %s201, %s202
      %p211 = scmp.eq.s32.totalorder %s23, 0
      %p212 = por %p210, %p211
      %p213 = scmp.ne.s32.totalorder %s201, %s202
      %p214 = scmp.eq.s32.totalorder %s24, 1
      %p215 = por %p213, %p214
      %p217 = scmp.ne.s32.totalorder %s202, %s216
      %p218 = scmp.eq.s32.totalorder %s24, 0
      %p219 = por %p217, %p218
      %s220 = ssub.s32 %s18, %s25
      %p221 = scmp.eq.s32.totalorder %s220, 0
      %s223 = sadd.s32 %s222, 1
      %s224 = scalar_select %p221, %s222, %s223
      %p227 = pneg %p221
      %p228 = scmp.eq.s32.totalorder %s18, 1
      %p229 = por %p227, %p228
      %p230 = scmp.ne.s32.totalorder %s222, %s225
      %p231 = scmp.eq.s32.totalorder %s18, 0
      %p232 = por %p230, %p231
      %p233 = scmp.ne.s32.totalorder %s222, %s225
      %p234 = scmp.eq.s32.totalorder %s23, 1
      %p235 = por %p233, %p234
      %p236 = scmp.ne.s32.totalorder %s225, %s226
      %p237 = scmp.eq.s32.totalorder %s23, 0
      %p238 = por %p236, %p237
      %p239 = scmp.ne.s32.totalorder %s225, %s226
      %p240 = scmp.eq.s32.totalorder %s24, 1
      %p241 = por %p239, %p240
      %p243 = scmp.ne.s32.totalorder %s226, %s242
      %p244 = scmp.eq.s32.totalorder %s24, 0
      %p245 = por %p243, %p244
      %p246 = scmp.le.s32.totalorder 1, %s18
      %p247 = scmp.lt.s32.totalorder %s18, 3
      %p248 = pnand %p246, %p247
      %p249 = pneg %p248
      // Predicated region
      $region9: #{tpu_custom_call.1} parent=5 // pred_check
        _
      $region10: #{tpu_custom_call.1} parent=5 // pred_check_branch
        %251 = sbr.rel (%p248) target = $region12
      $region11: #{tpu_custom_call.1} parent=5 // pred_region
        %s252 = ssub.s32 %s18, 1
        // Predicated region
        $region13: #{tpu_custom_call.1} parent=11 // pred_check
          %p253 = pneg %p65
        $region14: #{tpu_custom_call.1} parent=11 // pred_check_branch
          %255 = sbr.rel (%p253) target = $region16
        $region15: #{tpu_custom_call.1} parent=11 // pred_region
          _
        $region16: #{tpu_custom_call.1} parent=11 // pred_fallthru
          _
        // Predicated region
        $region17: #{tpu_custom_call.1} parent=11 // pred_check
          %p256 = pneg %p86
        $region18: #{tpu_custom_call.1} parent=11 // pred_check_branch
          %258 = sbr.rel (%p256) target = $region20
        $region19: #{tpu_custom_call.1} parent=11 // pred_region
          _
        $region20: #{tpu_custom_call.1} parent=11 // pred_fallthru
          _
        // Predicated region
        $region21: #{tpu_custom_call.1} parent=11 // pred_check
          %p259 = pneg %p107
        $region22: #{tpu_custom_call.1} parent=11 // pred_check_branch
          %261 = sbr.rel (%p259) target = $region24
        $region23: #{tpu_custom_call.1} parent=11 // pred_region
          _
        $region24: #{tpu_custom_call.1} parent=11 // pred_fallthru
          _
        // Predicated region
        $region25: #{tpu_custom_call.1} parent=11 // pred_check
          %p262 = pneg %p128
        $region26: #{tpu_custom_call.1} parent=11 // pred_check_branch
          %264 = sbr.rel (%p262) target = $region28
        $region27: #{tpu_custom_call.1} parent=11 // pred_region
          _
        $region28: #{tpu_custom_call.1} parent=11 // pred_fallthru
          _
        // Predicated region
        $region29: #{tpu_custom_call.1} parent=11 // pred_check
          %p265 = pneg %p149
        $region30: #{tpu_custom_call.1} parent=11 // pred_check_branch
          %267 = sbr.rel (%p265) target = $region32
        $region31: #{tpu_custom_call.1} parent=11 // pred_region
          _
        $region32: #{tpu_custom_call.1} parent=11 // pred_fallthru
          _
        // Predicated region
        $region33: #{tpu_custom_call.1} parent=11 // pred_check
          %p268 = pneg %p170
        $region34: #{tpu_custom_call.1} parent=11 // pred_check_branch
          %270 = sbr.rel (%p268) target = $region36
        $region35: #{tpu_custom_call.1} parent=11 // pred_region
          _
        $region36: #{tpu_custom_call.1} parent=11 // pred_fallthru
          _
        // Predicated region
        $region37: #{tpu_custom_call.1} parent=11 // pred_check
          %p271 = pneg %p191
        $region38: #{tpu_custom_call.1} parent=11 // pred_check_branch
          %273 = sbr.rel (%p271) target = $region40
        $region39: #{tpu_custom_call.1} parent=11 // pred_region
          _
        $region40: #{tpu_custom_call.1} parent=11 // pred_fallthru
          _
        // Predicated region
        $region41: #{tpu_custom_call.1} parent=11 // pred_check
          %p274 = pneg %p212
        $region42: #{tpu_custom_call.1} parent=11 // pred_check_branch
          %276 = sbr.rel (%p274) target = $region44
        $region43: #{tpu_custom_call.1} parent=11 // pred_region
          _
        $region44: #{tpu_custom_call.1} parent=11 // pred_fallthru
          _
      $region12: #{tpu_custom_call.1} parent=5 // pred_fallthru
        _
      %p277 = scmp.lt.s32.totalorder %s18, 2
      // Predicated region
      $region45: #{tpu_custom_call.1} parent=5 // pred_check
        %p278 = pneg %p277
      $region46: #{tpu_custom_call.1} parent=5 // pred_check_branch
        %280 = sbr.rel (%p278) target = $region48
      $region47: #{tpu_custom_call.1} parent=5 // pred_region
        // Predicated region
        $region49: #{tpu_custom_call.1} parent=47 // pred_check
          %p281 = pneg %p38
        $region50: #{tpu_custom_call.1} parent=47 // pred_check_branch
          %283 = sbr.rel (%p281) target = $region52
        $region51: #{tpu_custom_call.1} parent=47 // pred_region
          %p284 = scmp.lt.s32.totalorder %s18, 1
          %s285 = scalar_select %p284, %s18, 1
          %s286 = smul.addr %s285, 2
          %s287 = smul.addr %s286, 4
          %s288 = scalar_lea.vmem %s0, %s287
        $region52: #{tpu_custom_call.1} parent=47 // pred_fallthru
          _
      $region48: #{tpu_custom_call.1} parent=5 // pred_fallthru
        _
      %p289 = scmp.le.s32.totalorder 1, %s18
      %p290 = scmp.lt.s32.totalorder %s18, 3
      %p291 = pnand %p289, %p290
      %p292 = pneg %p291
      // Predicated region
      $region53: #{tpu_custom_call.1} parent=5 // pred_check
        _
      $region54: #{tpu_custom_call.1} parent=5 // pred_check_branch
        %294 = sbr.rel (%p291) target = $region56
      $region55: #{tpu_custom_call.1} parent=5 // pred_region
        %s295 = ssub.s32 %s18, 1
        %p296 = scmp.lt.s32.totalorder %s23, 1
        %s297 = scalar_select %p296, %s23, 1
        %s298 = smul.addr %s297, 2
        %s299 = smul.addr %s298, 4
        %s300 = scalar_lea.vmem %s0, %s299
        %p301 = pneg %p44
        %p302 = pneg %p41
        %p303 = pneg %p65
        %p304 = pneg %p62
        %p305 = pneg %p86
        %p306 = pneg %p83
        %p307 = pneg %p107
        %p308 = pneg %p104
        %p309 = pneg %p128
        %p310 = pneg %p125
        %p311 = pneg %p149
        %p312 = pneg %p146
        %p313 = pneg %p170
        %p314 = pneg %p167
        %p315 = pneg %p191
        %p316 = pneg %p188
        %p317 = pneg %p212
        %p318 = pneg %p209
        %p319 = pneg %p238
        %p320 = pneg %p235
        %s321 = sand.u32 %s225, 1
        %s322 = scalar_lea.sflag [#allocation3], %s321
        %s323 = sand.u32 %s225, 1
        %s324 = smul.addr %s323, 8
        %s325 = scalar_lea.vmem [#allocation2], %s324
        %p326 = scmp.lt.s32.totalorder %s23, 1
        %s327 = scalar_select %p326, %s23, 1
        %s328 = smul.addr %s327, 2
        %s329 = smul.addr %s328, 4
        %s330 = scalar_lea.vmem %s0, %s329
        %v332 = vld [vmem:[%s330] sm:$0xff]
        %v333 = vld [vmem:[%s1] sm:$0xf]
        %s334 = scalar_lea.vmem %s1, 4
        %v335 = vld [vmem:[%s334] sm:$0xf]
        %v337 = vunpack.c.l.b16 %v332
        %v338 = vunpack.c.h.b16 %v332
        %v339 = vpack.c.b16 %v337, %v337
        %v340 = vpack.c.b16 %v338, %v338
        %341 = vrot.lane.b32.xlu0 %v339, 127
        %v342 = vpop.permute.xlu0 %341
        %343 = vrot.lane.b32.xlu0 %v340, 127
        %v344 = vpop.permute.xlu0 %343
        %vm345 = vcmask 1039360
        %v346 = vsel %vm345, %v342, %v344
        %vm347 = vcmask 64512
        %v349 = vsel %vm347, %v335, 0
        %vm351 = vcmask 1043456
        %v353 = vsel %vm351, %v346, 0
        %v356 = vsel %vm351, %v344, 0
        %358 = vmatprep.subr.bf16.mxu0 %v356
        %359 = vmatpush1.bf16.msra.mxu0 %v353
        %360 = vmatprep.subr.bf16.mxu0 0
        %361 = vmatpush1.bf16.msra.mxu0 0
        %362 = vmatprep.subr.bf16.mxu0 0
        %363 = vmatpush1.bf16.msra.mxu0 0
        %364 = vmatprep.subr.bf16.mxu0 0
        %365 = vmatpush1.bf16.msra.mxu0 0
        %366 = vmatprep.subr.bf16.mxu0 0
        %367 = vmatpush1.bf16.msra.mxu0 0
        %368 = vmatprep.subr.bf16.mxu0 0
        %369 = vmatpush1.bf16.msra.mxu0 0
        %370 = vmatprep.subr.bf16.mxu0 0
        %371 = vmatpush1.bf16.msra.mxu0 0
        %372 = vmatprep.subr.bf16.mxu0 0
        %373 = vmatpush1.bf16.msra.mxu0 0
        %374 = vmatprep.subr.bf16.mxu0 0
        %375 = vmatpush1.bf16.msra.mxu0 0
        %376 = vmatprep.subr.bf16.mxu0 0
        %377 = vmatpush1.bf16.msra.mxu0 0
        %378 = vmatprep.subr.bf16.mxu0 0
        %379 = vmatpush1.bf16.msra.mxu0 0
        %380 = vmatprep.subr.bf16.mxu0 0
        %381 = vmatpush1.bf16.msra.mxu0 0
        %382 = vmatprep.subr.bf16.mxu0 0
        %383 = vmatpush1.bf16.msra.mxu0 0
        %384 = vmatprep.subr.bf16.mxu0 0
        %385 = vmatpush1.bf16.msra.mxu0 0
        %386 = vmatprep.subr.bf16.mxu0 0
        %387 = vmatpush1.bf16.msra.mxu0 0
        %388 = vmatprep.subr.bf16.mxu0 0
        %389 = vmatpush1.bf16.msra.mxu0 0
        %390 = vmatprep.mubr.bf16.mxu0 0
        %391 = vmatmul.mubr.bf16.gmra.mrb[0].mxu0 %v349
        %v392 = vpop.f32.mrb[0].mxu0
        %v393 = vadd.f32 0.0, %v392
        %v394 = vpop.f32.mrb[0].mxu0
        %v395 = vadd.f32 0.0, %v394
        %v396 = vpop.f32.mrb[0].mxu0
        %v397 = vpop.f32.mrb[0].mxu0
        %398 = vdwg.mxu0
        %v400 = vsel %vm347, %v333, 0
        %v403 = vsel %vm351, %v339, 0
        %v406 = vsel %vm351, %v340, 0
        %408 = vmatprep.subr.bf16.mxu0 %v406
        %409 = vmatpush1.bf16.msra.mxu0 %v403
        %410 = vmatprep.subr.bf16.mxu0 0
        %411 = vmatpush1.bf16.msra.mxu0 0
        %412 = vmatprep.subr.bf16.mxu0 0
        %413 = vmatpush1.bf16.msra.mxu0 0
        %414 = vmatprep.subr.bf16.mxu0 0
        %415 = vmatpush1.bf16.msra.mxu0 0
        %416 = vmatprep.subr.bf16.mxu0 0
        %417 = vmatpush1.bf16.msra.mxu0 0
        %418 = vmatprep.subr.bf16.mxu0 0
        %419 = vmatpush1.bf16.msra.mxu0 0
        %420 = vmatprep.subr.bf16.mxu0 0
        %421 = vmatpush1.bf16.msra.mxu0 0
        %422 = vmatprep.subr.bf16.mxu0 0
        %423 = vmatpush1.bf16.msra.mxu0 0
        %424 = vmatprep.subr.bf16.mxu0 0
        %425 = vmatpush1.bf16.msra.mxu0 0
        %426 = vmatprep.subr.bf16.mxu0 0
        %427 = vmatpush1.bf16.msra.mxu0 0
        %428 = vmatprep.subr.bf16.mxu0 0
        %429 = vmatpush1.bf16.msra.mxu0 0
        %430 = vmatprep.subr.bf16.mxu0 0
        %431 = vmatpush1.bf16.msra.mxu0 0
        %432 = vmatprep.subr.bf16.mxu0 0
        %433 = vmatpush1.bf16.msra.mxu0 0
        %434 = vmatprep.subr.bf16.mxu0 0
        %435 = vmatpush1.bf16.msra.mxu0 0
        %436 = vmatprep.subr.bf16.mxu0 0
        %437 = vmatpush1.bf16.msra.mxu0 0
        %438 = vmatprep.subr.bf16.mxu0 0
        %439 = vmatpush1.bf16.msra.mxu0 0
        %440 = vmatprep.mubr.bf16.mxu0 0
        %441 = vmatmul.mubr.bf16.gmra.mrb[0].mxu0 %v400
        %v442 = vpop.f32.mrb[0].mxu0
        %v443 = vadd.f32 %v393, %v442
        %v444 = vpop.f32.mrb[0].mxu0
        %v445 = vadd.f32 %v395, %v444
        %v446 = vpop.f32.mrb[0].mxu0
        %v447 = vpop.f32.mrb[0].mxu0
        %448 = vdwg.mxu0
        %s449 = scalar_lea.vmem %s1, 8
        %v450 = vld [vmem:[%s449] sm:$0xf]
        %451 = vrot.lane.b32.xlu0 %v339, 126
        %v452 = vpop.permute.xlu0 %451
        %453 = vrot.lane.b32.xlu0 %v340, 126
        %v454 = vpop.permute.xlu0 %453
        %vm455 = vcmask 1031168
        %v456 = vsel %vm455, %v452, %v454
        %v458 = vsel %vm347, %v450, 0
        %v461 = vsel %vm351, %v456, 0
        %v464 = vsel %vm351, %v454, 0
        %466 = vmatprep.subr.bf16.mxu0 %v464
        %467 = vmatpush1.bf16.msra.mxu0 %v461
        %468 = vmatprep.subr.bf16.mxu0 0
        %469 = vmatpush1.bf16.msra.mxu0 0
        %470 = vmatprep.subr.bf16.mxu0 0
        %471 = vmatpush1.bf16.msra.mxu0 0
        %472 = vmatprep.subr.bf16.mxu0 0
        %473 = vmatpush1.bf16.msra.mxu0 0
        %474 = vmatprep.subr.bf16.mxu0 0
        %475 = vmatpush1.bf16.msra.mxu0 0
        %476 = vmatprep.subr.bf16.mxu0 0
        %477 = vmatpush1.bf16.msra.mxu0 0
        %478 = vmatprep.subr.bf16.mxu0 0
        %479 = vmatpush1.bf16.msra.mxu0 0
        %480 = vmatprep.subr.bf16.mxu0 0
        %481 = vmatpush1.bf16.msra.mxu0 0
        %482 = vmatprep.subr.bf16.mxu0 0
        %483 = vmatpush1.bf16.msra.mxu0 0
        %484 = vmatprep.subr.bf16.mxu0 0
        %485 = vmatpush1.bf16.msra.mxu0 0
        %486 = vmatprep.subr.bf16.mxu0 0
        %487 = vmatpush1.bf16.msra.mxu0 0
        %488 = vmatprep.subr.bf16.mxu0 0
        %489 = vmatpush1.bf16.msra.mxu0 0
        %490 = vmatprep.subr.bf16.mxu0 0
        %491 = vmatpush1.bf16.msra.mxu0 0
        %492 = vmatprep.subr.bf16.mxu0 0
        %493 = vmatpush1.bf16.msra.mxu0 0
        %494 = vmatprep.subr.bf16.mxu0 0
        %495 = vmatpush1.bf16.msra.mxu0 0
        %496 = vmatprep.subr.bf16.mxu0 0
        %497 = vmatpush1.bf16.msra.mxu0 0
        %498 = vmatprep.mubr.bf16.mxu0 0
        %499 = vmatmul.mubr.bf16.gmra.mrb[0].mxu0 %v458
        %v500 = vpop.f32.mrb[0].mxu0
        %v501 = vadd.f32 0.0, %v500
        %v502 = vpop.f32.mrb[0].mxu0
        %v503 = vadd.f32 0.0, %v502
        %v504 = vpop.f32.mrb[0].mxu0
        %v505 = vpop.f32.mrb[0].mxu0
        %506 = vdwg.mxu0
        %v507 = vadd.f32 %v443, %v501
        %v508 = vadd.f32 %v445, %v503
        %v509 = vld [vmem:[%s2] sm:$0xff]
        %511 = vset.pattern.permute.xlu0 0
        %512 = vperm.xlu0 %511, %v509
        %v513 = vpop.permute.xlu0 %512
        %v515 = vmul.f32 %v507, %v513
        %v516 = vmul.f32 %v508, %v513
        %v517 = vld [vmem:[%s3] sm:$0xff]
        %519 = vset.pattern.permute.xlu0 0
        %520 = vperm.xlu0 %519, %v517
        %v521 = vpop.permute.xlu0 %520
        %v523 = vadd.f32 %v515, %v521
        %v524 = vadd.f32 %v516, %v521
        %v525 = vmax.f32 %v523, 0.0
        %v526 = vmax.f32 %v524, 0.0
        %v527 = vlaneseq
        %v528 = vand.u32 %v527, 127
        %v529 = vadd.s32 %v528, 128
        %vm530 = vcmp.ge.s32.totalorder %v528, 2
        %vm531 = vcmp.ge.s32.totalorder %v529, 2
        %v532 = vsel %vm530, %v525, 0.0
        %v533 = vsel %vm531, %v526, 0.0
        %v534 = vpack.c.bf16 %v532, %v532
        %v535 = vpack.c.bf16 %v533, %v533
        %v536 = vld [vmem:[%s4] sm:$0xf]
        %s537 = scalar_lea.vmem %s4, 4
        %v538 = vld [vmem:[%s537] sm:$0xf]
        %541 = vrot.lane.b32.xlu0 %v534, 127
        %v542 = vpop.permute.xlu0 %541
        %543 = vrot.lane.b32.xlu0 %v535, 127
        %v544 = vpop.permute.xlu0 %543
        %v545 = vsel %vm345, %v542, %v544
        %v547 = vsel %vm347, %v538, 0
        %v550 = vsel %vm351, %v545, 0
        %552 = vmatprep.subr.bf16.mxu0 0
        %553 = vmatpush1.bf16.msra.mxu0 %v550
        %554 = vmatprep.subr.bf16.mxu0 0
        %555 = vmatpush1.bf16.msra.mxu0 0
        %556 = vmatprep.subr.bf16.mxu0 0
        %557 = vmatpush1.bf16.msra.mxu0 0
        %558 = vmatprep.subr.bf16.mxu0 0
        %559 = vmatpush1.bf16.msra.mxu0 0
        %560 = vmatprep.subr.bf16.mxu0 0
        %561 = vmatpush1.bf16.msra.mxu0 0
        %562 = vmatprep.subr.bf16.mxu0 0
        %563 = vmatpush1.bf16.msra.mxu0 0
        %564 = vmatprep.subr.bf16.mxu0 0
        %565 = vmatpush1.bf16.msra.mxu0 0
        %566 = vmatprep.subr.bf16.mxu0 0
        %567 = vmatpush1.bf16.msra.mxu0 0
        %568 = vmatprep.subr.bf16.mxu0 0
        %569 = vmatpush1.bf16.msra.mxu0 0
        %570 = vmatprep.subr.bf16.mxu0 0
        %571 = vmatpush1.bf16.msra.mxu0 0
        %572 = vmatprep.subr.bf16.mxu0 0
        %573 = vmatpush1.bf16.msra.mxu0 0
        %574 = vmatprep.subr.bf16.mxu0 0
        %575 = vmatpush1.bf16.msra.mxu0 0
        %576 = vmatprep.subr.bf16.mxu0 0
        %577 = vmatpush1.bf16.msra.mxu0 0
        %578 = vmatprep.subr.bf16.mxu0 0
        %579 = vmatpush1.bf16.msra.mxu0 0
        %580 = vmatprep.subr.bf16.mxu0 0
        %581 = vmatpush1.bf16.msra.mxu0 0
        %582 = vmatprep.subr.bf16.mxu0 0
        %583 = vmatpush1.bf16.msra.mxu0 0
        %584 = vmatprep.mubr.bf16.mxu0 0
        %585 = vmatmul.mubr.bf16.gmra.mrb[0].mxu0 %v547
        %v586 = vpop.f32.mrb[0].mxu0
        %v587 = vadd.f32 0.0, %v586
        %v588 = vpop.f32.mrb[0].mxu0
        %v589 = vpop.f32.mrb[0].mxu0
        %v590 = vpop.f32.mrb[0].mxu0
        %591 = vdwg.mxu0
        %v593 = vsel %vm347, %v536, 0
        %v596 = vsel %vm351, %v534, 0
        %598 = vmatprep.subr.bf16.mxu0 0
        %599 = vmatpush1.bf16.msra.mxu0 %v596
        %600 = vmatprep.subr.bf16.mxu0 0
        %601 = vmatpush1.bf16.msra.mxu0 0
        %602 = vmatprep.subr.bf16.mxu0 0
        %603 = vmatpush1.bf16.msra.mxu0 0
        %604 = vmatprep.subr.bf16.mxu0 0
        %605 = vmatpush1.bf16.msra.mxu0 0
        %606 = vmatprep.subr.bf16.mxu0 0
        %607 = vmatpush1.bf16.msra.mxu0 0
        %608 = vmatprep.subr.bf16.mxu0 0
        %609 = vmatpush1.bf16.msra.mxu0 0
        %610 = vmatprep.subr.bf16.mxu0 0
        %611 = vmatpush1.bf16.msra.mxu0 0
        %612 = vmatprep.subr.bf16.mxu0 0
        %613 = vmatpush1.bf16.msra.mxu0 0
        %614 = vmatprep.subr.bf16.mxu0 0
        %615 = vmatpush1.bf16.msra.mxu0 0
        %616 = vmatprep.subr.bf16.mxu0 0
        %617 = vmatpush1.bf16.msra.mxu0 0
        %618 = vmatprep.subr.bf16.mxu0 0
        %619 = vmatpush1.bf16.msra.mxu0 0
        %620 = vmatprep.subr.bf16.mxu0 0
        %621 = vmatpush1.bf16.msra.mxu0 0
        %622 = vmatprep.subr.bf16.mxu0 0
        %623 = vmatpush1.bf16.msra.mxu0 0
        %624 = vmatprep.subr.bf16.mxu0 0
        %625 = vmatpush1.bf16.msra.mxu0 0
        %626 = vmatprep.subr.bf16.mxu0 0
        %627 = vmatpush1.bf16.msra.mxu0 0
        %628 = vmatprep.subr.bf16.mxu0 0
        %629 = vmatpush1.bf16.msra.mxu0 0
        %630 = vmatprep.mubr.bf16.mxu0 0
        %631 = vmatmul.mubr.bf16.gmra.mrb[0].mxu0 %v593
        %v632 = vpop.f32.mrb[0].mxu0
        %v633 = vadd.f32 %v587, %v632
        %v634 = vpop.f32.mrb[0].mxu0
        %v635 = vpop.f32.mrb[0].mxu0
        %v636 = vpop.f32.mrb[0].mxu0
        %637 = vdwg.mxu0
        %s638 = scalar_lea.vmem %s4, 8
        %v639 = vld [vmem:[%s638] sm:$0xf]
        %640 = vrot.lane.b32.xlu0 %v534, 126
        %v641 = vpop.permute.xlu0 %640
        %642 = vrot.lane.b32.xlu0 %v535, 126
        %v643 = vpop.permute.xlu0 %642
        %v644 = vsel %vm455, %v641, %v643
        %v646 = vsel %vm347, %v639, 0
        %v649 = vsel %vm351, %v644, 0
        %651 = vmatprep.subr.bf16.mxu0 0
        %652 = vmatpush1.bf16.msra.mxu0 %v649
        %653 = vmatprep.subr.bf16.mxu0 0
        %654 = vmatpush1.bf16.msra.mxu0 0
        %655 = vmatprep.subr.bf16.mxu0 0
        %656 = vmatpush1.bf16.msra.mxu0 0
        %657 = vmatprep.subr.bf16.mxu0 0
        %658 = vmatpush1.bf16.msra.mxu0 0
        %659 = vmatprep.subr.bf16.mxu0 0
        %660 = vmatpush1.bf16.msra.mxu0 0
        %661 = vmatprep.subr.bf16.mxu0 0
        %662 = vmatpush1.bf16.msra.mxu0 0
        %663 = vmatprep.subr.bf16.mxu0 0
        %664 = vmatpush1.bf16.msra.mxu0 0
        %665 = vmatprep.subr.bf16.mxu0 0
        %666 = vmatpush1.bf16.msra.mxu0 0
        %667 = vmatprep.subr.bf16.mxu0 0
        %668 = vmatpush1.bf16.msra.mxu0 0
        %669 = vmatprep.subr.bf16.mxu0 0
        %670 = vmatpush1.bf16.msra.mxu0 0
        %671 = vmatprep.subr.bf16.mxu0 0
        %672 = vmatpush1.bf16.msra.mxu0 0
        %673 = vmatprep.subr.bf16.mxu0 0
        %674 = vmatpush1.bf16.msra.mxu0 0
        %675 = vmatprep.subr.bf16.mxu0 0
        %676 = vmatpush1.bf16.msra.mxu0 0
        %677 = vmatprep.subr.bf16.mxu0 0
        %678 = vmatpush1.bf16.msra.mxu0 0
        %679 = vmatprep.subr.bf16.mxu0 0
        %680 = vmatpush1.bf16.msra.mxu0 0
        %681 = vmatprep.subr.bf16.mxu0 0
        %682 = vmatpush1.bf16.msra.mxu0 0
        %683 = vmatprep.mubr.bf16.mxu0 0
        %684 = vmatmul.mubr.bf16.gmra.mrb[0].mxu0 %v646
        %v685 = vpop.f32.mrb[0].mxu0
        %v686 = vadd.f32 0.0, %v685
        %v687 = vpop.f32.mrb[0].mxu0
        %v688 = vpop.f32.mrb[0].mxu0
        %v689 = vpop.f32.mrb[0].mxu0
        %690 = vdwg.mxu0
        %v691 = vadd.f32 %v633, %v686
        %v692 = vld [vmem:[%s5] sm:$0xff]
        %694 = vset.pattern.permute.xlu0 0
        %695 = vperm.xlu0 %694, %v692
        %v696 = vpop.permute.xlu0 %695
        %v698 = vmul.f32 %v691, %v696
        %v699 = vld [vmem:[%s6] sm:$0xff]
        %701 = vset.pattern.permute.xlu0 0
        %702 = vperm.xlu0 %701, %v699
        %v703 = vpop.permute.xlu0 %702
        %v705 = vadd.f32 %v698, %v703
        %v706 = vmax.f32 %v705, 0.0
        %v707 = vld [vmem:[%s7] sm:$0xf]
        %v708 = vld [vmem:[%s8] sm:$0xff]
        %710 = vset.pattern.permute.xlu0 0
        %711 = vperm.xlu0 %710, %v708
        %v712 = vpop.permute.xlu0 %711
        %714 = vrot.lane.b32.xlu0 %v339, 124
        %v715 = vpop.permute.xlu0 %714
        %716 = vrot.lane.b32.xlu0 %v340, 124
        %v717 = vpop.permute.xlu0 %716
        %vm718 = vcmask 1014784
        %v719 = vsel %vm718, %v715, %v717
        %v721 = vsel %vm347, %v707, 0
        %v724 = vsel %vm351, %v719, 0
        %726 = vmatprep.subr.bf16.mxu0 0
        %727 = vmatpush1.bf16.msra.mxu0 %v724
        %728 = vmatprep.subr.bf16.mxu0 0
        %729 = vmatpush1.bf16.msra.mxu0 0
        %730 = vmatprep.subr.bf16.mxu0 0
        %731 = vmatpush1.bf16.msra.mxu0 0
        %732 = vmatprep.subr.bf16.mxu0 0
        %733 = vmatpush1.bf16.msra.mxu0 0
        %734 = vmatprep.subr.bf16.mxu0 0
        %735 = vmatpush1.bf16.msra.mxu0 0
        %736 = vmatprep.subr.bf16.mxu0 0
        %737 = vmatpush1.bf16.msra.mxu0 0
        %738 = vmatprep.subr.bf16.mxu0 0
        %739 = vmatpush1.bf16.msra.mxu0 0
        %740 = vmatprep.subr.bf16.mxu0 0
        %741 = vmatpush1.bf16.msra.mxu0 0
        %742 = vmatprep.subr.bf16.mxu0 0
        %743 = vmatpush1.bf16.msra.mxu0 0
        %744 = vmatprep.subr.bf16.mxu0 0
        %745 = vmatpush1.bf16.msra.mxu0 0
        %746 = vmatprep.subr.bf16.mxu0 0
        %747 = vmatpush1.bf16.msra.mxu0 0
        %748 = vmatprep.subr.bf16.mxu0 0
        %749 = vmatpush1.bf16.msra.mxu0 0
        %750 = vmatprep.subr.bf16.mxu0 0
        %751 = vmatpush1.bf16.msra.mxu0 0
        %752 = vmatprep.subr.bf16.mxu0 0
        %753 = vmatpush1.bf16.msra.mxu0 0
        %754 = vmatprep.subr.bf16.mxu0 0
        %755 = vmatpush1.bf16.msra.mxu0 0
        %756 = vmatprep.subr.bf16.mxu0 0
        %757 = vmatpush1.bf16.msra.mxu0 0
        %758 = vmatprep.mubr.bf16.mxu0 0
        %759 = vmatmul.mubr.bf16.gmra.mrb[0].mxu0 %v721
        %v760 = vpop.f32.mrb[0].mxu0
        %v761 = vadd.f32 %v712, %v760
        %v762 = vpop.f32.mrb[0].mxu0
        %v763 = vpop.f32.mrb[0].mxu0
        %v764 = vpop.f32.mrb[0].mxu0
        %765 = vdwg.mxu0
        %v766 = vadd.f32 %v706, %v761
        %767 = vst [vmem:[%s325] sm:$0xff] %v766
        %s768 = sand.u32 %s225, 1
        %s769 = scalar_lea.sflag [#allocation3], %s768
        %s770 = sand.u32 %s225, 1
        %s771 = smul.addr %s770, 8
        %s772 = scalar_lea.vmem [#allocation2], %s771
        // Predicated region
        $region57: #{tpu_custom_call.1} parent=55 // pred_check
          %p773 = pneg %p235
        $region58: #{tpu_custom_call.1} parent=55 // pred_check_branch
          %775 = sbr.rel (%p773) target = $region60
        $region59: #{tpu_custom_call.1} parent=55 // pred_region
          %s777 = ssub.s32 128, 128
          %778 = vsyncadd %s769, %s777
          %s779 = smul.addr %s23, 128
          %s780 = scalar_lea.hbm %s9, %s779
          %s782 = sshll.u32 %s772, 4
          %s783 = int_to_ptr.vmem [resolvable:$true] %s782
          %785 = dma.vmem_to_hbm [thread:$0]  %s783, 128, %s780, %s769
        $region60: #{tpu_custom_call.1} parent=55 // pred_fallthru
          _
      $region56: #{tpu_custom_call.1} parent=5 // pred_fallthru
        _
      %p786 = scmp.le.s32.totalorder 2, %s18
      // Predicated region
      $region61: #{tpu_custom_call.1} parent=5 // pred_check
        %p787 = pneg %p786
      $region62: #{tpu_custom_call.1} parent=5 // pred_check_branch
        %789 = sbr.rel (%p787) target = $region64
      $region63: #{tpu_custom_call.1} parent=5 // pred_region
        %s790 = ssub.s32 %s18, 2
        // Predicated region
        $region65: #{tpu_custom_call.1} parent=63 // pred_check
          %p791 = pneg %p241
        $region66: #{tpu_custom_call.1} parent=63 // pred_check_branch
          %793 = sbr.rel (%p791) target = $region68
        $region67: #{tpu_custom_call.1} parent=63 // pred_region
          %s794 = sand.u32 %s226, 1
          %s795 = scalar_lea.sflag [#allocation3], %s794
          %s796 = sand.u32 %s226, 1
          %s797 = smul.addr %s796, 8
          %s798 = scalar_lea.vmem [#allocation2], %s797
          %799 = dma.done %s795, 128
        $region68: #{tpu_custom_call.1} parent=63 // pred_fallthru
          _
      $region64: #{tpu_custom_call.1} parent=5 // pred_fallthru
        _
    $region6: #{tpu_custom_call.1} parent=1 // loop_footer
      %s22 = sadd.s32 1, %s18
    $region7: #{tpu_custom_call.1} parent=1 // loop_footer_branch
      %17 = sbr.rel target = $region3
    $region8: #{tpu_custom_call.1} parent=1 // loop_exit
      _
    %800 = vsyncpa [#allocation3], 1
    %s801 = scalar_lea.sflag [#allocation3], 1
    %802 = vsyncpa %s801, 1

</llo_original>
